<compile_context>
chip_gen: v7x
topology: tpu7x:2x2x1
jax: 0.10.0
libtpu: 0.0.40
codegen_flags: <defaults>
</compile_context>

<pallas_src>
import functools

import jax
import jax.numpy as jnp
from jax.experimental import pallas as pl
from jax.experimental.pallas import tpu as pltpu

LN_EPS = 1e-5  # torch.nn.LayerNorm default


def _class_head_kernel(x_ref, gamma_ref, beta_ref, w_ref, b_ref, o_ref, acc_ref,
                       *, seq_len, token_tile, mask_tokens):
    s = pl.program_id(1)
    last = pl.num_programs(1) - 1

    # --- init accumulator on the first reduction step -------------------------
    @pl.when(s == 0)
    def _():
        acc_ref[...] = jnp.zeros_like(acc_ref)

    # --- accumulate token sums in f32 ------------------------------------------
    if mask_tokens:
        # Full tiles: plain sum (keep the mask off the hot path / VPU).
        @pl.when(s != last)
        def _():
            acc_ref[...] += jnp.sum(x_ref[...], axis=1, dtype=jnp.float32)

        # Partial last tile only: zero out tokens past the true sequence length.
        @pl.when(s == last)
        def _():
            x = x_ref[...]
            tok = s * token_tile + jax.lax.broadcasted_iota(jnp.int32, x.shape, 1)
            x = jnp.where(tok < seq_len, x, jnp.zeros_like(x))
            acc_ref[...] += jnp.sum(x, axis=1, dtype=jnp.float32)
    else:
        acc_ref[...] += jnp.sum(x_ref[...], axis=1, dtype=jnp.float32)

    # --- finalize: mean -> LayerNorm -> Linear on the last reduction step -----
    @pl.when(s == last)
    def _():
        pooled = acc_ref[...] * (1.0 / seq_len)                              # (TB, D) f32
        mu = jnp.mean(pooled, axis=-1, keepdims=True)
        var = jnp.mean((pooled - mu) ** 2, axis=-1, keepdims=True)           # biased (torch LN)
        normed = (pooled - mu) * jax.lax.rsqrt(var + LN_EPS)
        y = normed * gamma_ref[...].astype(jnp.float32) + beta_ref[...].astype(jnp.float32)
        # MXU-native matmul: cast the tiny (TB, D) activation to W's dtype instead
        # of materializing an f32 copy of W; f32 accumulator keeps accuracy.
        out = jnp.dot(y.astype(w_ref.dtype), w_ref[...],
                      preferred_element_type=jnp.float32)                    # (TB, C)
        out = out + b_ref[...].astype(jnp.float32)
        o_ref[...] = out.astype(o_ref.dtype)


def _round_up(v, m):
    return ((v + m - 1) // m) * m


def _vmem_capacity_bytes():
    try:
        return int(pltpu.get_tpu_info().vmem_capacity_bytes)
    except Exception:
        return 64 * 1024 * 1024  # conservative: v7x per-TensorCore VMEM


def class_head(x, gamma, beta, w, b, *, token_tile_bytes=None):
    B, S, D = x.shape
    C = w.shape[1]
    itemsize = jnp.dtype(x.dtype).itemsize
    out_dtype = x.dtype
    out_itemsize = jnp.dtype(out_dtype).itemsize

    vmem_cap = _vmem_capacity_bytes()

    # Generation-aware x-tile target: bigger on 128-MiB-VMEM v5e/v6e, smaller on
    # 64-MiB v7x (whose 3.2 TB/s HBM makes per-step overhead relatively costlier,
    # but whose VMEM is half the size).
    if token_tile_bytes is None:
        token_tile_bytes = (20 * 1024 * 1024 if vmem_cap > 96 * 1024 * 1024
                            else 10 * 1024 * 1024)

    # --- batch tile ------------------------------------------------------------
    if B >= 16:
        TB = min(_round_up(B, 8), 128)
        if TB >= B:
            # Keep >= 2 batch blocks so the "parallel" axis can shard across both
            # TensorCores on v7x (harmless on single-TC v5e/v6e).
            TB = min(_round_up(-(-B // 2), 8), 128)
    else:
        TB = B  # block dim == full array dim (no sublane-alignment concerns)

    # --- budget resident params, then size the streamed x tile ------------------
    param_bytes = sum(int(a.size) * jnp.dtype(a.dtype).itemsize
                      for a in (gamma, beta, w, b))
    acc_bytes = TB * D * 4
    budget = int(0.55 * vmem_cap)  # headroom for compiler scratch / output buffers
    x_tile_budget = max(512 * 1024, (budget - 2 * param_bytes - acc_bytes) // 2)
    tile_bytes = min(token_tile_bytes, x_tile_budget)

    ts = max(8, tile_bytes // max(1, TB * D * itemsize))
    ts = max(8, (ts // 8) * 8)                      # sublane-aligned token tile
    TS = S if ts >= S else ts
    mask_tokens = (S % TS) != 0

    grid = (pl.cdiv(B, TB), pl.cdiv(S, TS))

    kernel = functools.partial(
        _class_head_kernel, seq_len=S, token_tile=TS, mask_tokens=mask_tokens)

    # VMEM estimate: double-buffered x tile + params (worst case double-buffered)
    # + accumulator + output block; limit capped below the chip's physical VMEM.
    est = (2 * TB * TS * D * itemsize
           + 2 * param_bytes
           + acc_bytes
           + 2 * TB * C * out_itemsize)
    vmem_limit = int(min(int(0.9 * vmem_cap), max(32 * 1024 * 1024, 2 * est)))

    cost = pl.CostEstimate(
        flops=2 * B * D * C + B * S * D + 8 * B * D,
        transcendentals=B,
        bytes_accessed=B * S * D * itemsize + param_bytes + B * C * out_itemsize,
    )

    def build(single_buffer_params):
        param_kw = ({"pipeline_mode": pl.Buffered(1)} if single_buffer_params else {})
        in_specs = [
            pl.BlockSpec((TB, TS, D), lambda i, s: (i, s, 0)),             # streamed x
            pl.BlockSpec((1, D), lambda i, s: (0, 0), **param_kw),         # gamma (resident)
            pl.BlockSpec((1, D), lambda i, s: (0, 0), **param_kw),         # beta  (resident)
            pl.BlockSpec((D, C), lambda i, s: (0, 0), **param_kw),         # W     (resident)
            pl.BlockSpec((1, C), lambda i, s: (0, 0), **param_kw),         # bias  (resident)
        ]
        return pl.pallas_call(
            kernel,
            out_shape=jax.ShapeDtypeStruct((B, C), out_dtype),
            grid=grid,
            in_specs=in_specs,
            out_specs=pl.BlockSpec((TB, C), lambda i, s: (i, 0)),           # same block across S
            scratch_shapes=[pltpu.VMEM((TB, D), jnp.float32)],              # pooled-sum accumulator
            compiler_params=pltpu.CompilerParams(
                dimension_semantics=("parallel", "arbitrary"),
                vmem_limit_bytes=vmem_limit,
            ),
            cost_estimate=cost,
        )

    try:
        return build(single_buffer_params=True)(x, gamma, beta, w, b)
    except Exception:
        # Fallback if this JAX/Mosaic build rejects single-buffered
        # (pipeline_mode=pl.Buffered(1)) constant-index parameter blocks.
        return build(single_buffer_params=False)(x, gamma, beta, w, b)


if __name__ == "__main__":
    B, S, D, C = 2, 8, 32, 10  # batch, seq, emb_dim, n_classes

    key = jax.random.PRNGKey(0)
    kx, kw, kb = jax.random.split(key, 3)

    x = jax.random.normal(kx, (B, S, D), dtype=jnp.float32)

    # Deterministic parameter init (synthetic; mirrors module shapes).
    gamma = jnp.ones((1, D), dtype=jnp.float32)   # LayerNorm weight init = 1
    beta = jnp.zeros((1, D), dtype=jnp.float32)   # LayerNorm bias init = 0
    bound = 1.0 / jnp.sqrt(D)
    w = jax.random.uniform(kw, (D, C), minval=-bound, maxval=bound,
                           dtype=jnp.float32)     # Linear weight (stored as (in, out))
    b = jax.random.uniform(kb, (1, C), minval=-bound, maxval=bound,
                           dtype=jnp.float32)     # Linear bias

    out = class_head(x, gamma, beta, w, b)
    out = jax.block_until_ready(out)

    # Pure-JAX reference of the same math.
    pooled = x.mean(axis=1)
    mu = pooled.mean(axis=-1, keepdims=True)
    var = ((pooled - mu) ** 2).mean(axis=-1, keepdims=True)
    ref = ((pooled - mu) / jnp.sqrt(var + LN_EPS)) * gamma + beta
    ref = ref @ w + b
    assert out.shape == (B, C)
    assert jnp.allclose(out, ref, atol=1e-5, rtol=1e-5)

    print("KERNEL_OK")
</pallas_src>

<mosaic_0001>
module attributes {stable_mosaic.version = 11 : i64} {
  func.func @_class_head_kernel(%arg0: i32, %arg1: i32, %arg2: memref<2x8x32xf32, #tpu.memory_space<vmem>>, %arg3: memref<1x32xf32, #tpu.memory_space<vmem>>, %arg4: memref<1x32xf32, #tpu.memory_space<vmem>>, %arg5: memref<32x10xf32, #tpu.memory_space<vmem>>, %arg6: memref<1x10xf32, #tpu.memory_space<vmem>>, %arg7: memref<2x10xf32, #tpu.memory_space<vmem>>, %arg8: memref<2x32xf32, #tpu.memory_space<vmem>>) attributes {dimension_semantics = [#tpu.dimension_semantics<parallel>, #tpu.dimension_semantics<arbitrary>], iteration_bounds = array<i64: 1, 1>, scalar_prefetch = 0 : i64, scratch_operands = 1 : i64, tpu.core_type = #tpu.core_type<tc>, window_params = [{transform_indices = @transform_0, window_bounds = array<i64: 2, 8, 32>}, {pipeline_mode = #tpu.pipeline_mode<synchronous>, transform_indices = @transform_1, window_bounds = array<i64: 1, 32>}, {pipeline_mode = #tpu.pipeline_mode<synchronous>, transform_indices = @transform_2, window_bounds = array<i64: 1, 32>}, {pipeline_mode = #tpu.pipeline_mode<synchronous>, transform_indices = @transform_3, window_bounds = array<i64: 32, 10>}, {pipeline_mode = #tpu.pipeline_mode<synchronous>, transform_indices = @transform_4, window_bounds = array<i64: 1, 10>}, {transform_indices = @transform_5, window_bounds = array<i64: 2, 10>}]} {
    %c0_i32 = arith.constant 0 : i32
    %0 = arith.cmpi eq, %arg1, %c0_i32 : i32
    %1 = arith.extui %0 : i1 to i32
    %c0_i32_0 = arith.constant 0 : i32
    %2 = arith.cmpi ne, %1, %c0_i32_0 : i32
    scf.if %2 {
      %cst_9 = arith.constant 0.000000e+00 : f32
      %11 = vector.broadcast %cst_9 : f32 to vector<2x32xf32>
      %c0_10 = arith.constant 0 : index
      %c0_11 = arith.constant 0 : index
      %12 = vector.load %arg8[%c0_10, %c0_11] : memref<2x32xf32, #tpu.memory_space<vmem>>, vector<2x32xf32>
      tpu.vector_store %arg8[%c0_10, %c0_11], %11 {strides = array<i32>} : memref<2x32xf32, #tpu.memory_space<vmem>>, vector<2x32xf32>,
    } else {
    }
    %c0 = arith.constant 0 : index
    %c0_1 = arith.constant 0 : index
    %3 = vector.load %arg8[%c0, %c0_1] : memref<2x32xf32, #tpu.memory_space<vmem>>, vector<2x32xf32>
    %c0_2 = arith.constant 0 : index
    %c0_3 = arith.constant 0 : index
    %c0_4 = arith.constant 0 : index
    %4 = vector.load %arg2[%c0_2, %c0_3, %c0_4] : memref<2x8x32xf32, #tpu.memory_space<vmem>>, vector<2x8x32xf32>
    %cst = arith.constant dense<0.000000e+00> : vector<2x32xf32>
    %5 = vector.multi_reduction <add>, %4, %cst [1] : vector<2x8x32xf32> to vector<2x32xf32>
    %6 = arith.addf %3, %5 : vector<2x32xf32>
    %c0_5 = arith.constant 0 : index
    %c0_6 = arith.constant 0 : index
    %7 = vector.load %arg8[%c0_5, %c0_6] : memref<2x32xf32, #tpu.memory_space<vmem>>, vector<2x32xf32>
    tpu.vector_store %arg8[%c0_5, %c0_6], %6 {strides = array<i32>} : memref<2x32xf32, #tpu.memory_space<vmem>>, vector<2x32xf32>,
    %c0_i32_7 = arith.constant 0 : i32
    %8 = arith.cmpi eq, %arg1, %c0_i32_7 : i32
    %9 = arith.extui %8 : i1 to i32
    %c0_i32_8 = arith.constant 0 : i32
    %10 = arith.cmpi ne, %9, %c0_i32_8 : i32
    scf.if %10 {
      %c0_9 = arith.constant 0 : index
      %c0_10 = arith.constant 0 : index
      %11 = vector.load %arg8[%c0_9, %c0_10] : memref<2x32xf32, #tpu.memory_space<vmem>>, vector<2x32xf32>
      %cst_11 = arith.constant 1.250000e-01 : f32
      %12 = vector.broadcast %cst_11 : f32 to vector<2x32xf32>
      %13 = arith.mulf %11, %12 : vector<2x32xf32>
      %cst_12 = arith.constant dense<0.000000e+00> : vector<2xf32>
      %14 = vector.multi_reduction <add>, %13, %cst_12 [1] : vector<2x32xf32> to vector<2xf32>
      %15 = vector.shape_cast %14 : vector<2xf32> to vector<2x1xf32>
      %cst_13 = arith.constant 3.200000e+01 : f32
      %16 = vector.broadcast %cst_13 : f32 to vector<2x1xf32>
      %17 = arith.divf %15, %16 : vector<2x1xf32>
      %18 = vector.broadcast %17 : vector<2x1xf32> to vector<2x32xf32>
      %19 = arith.subf %13, %18 : vector<2x32xf32>
      %20 = arith.mulf %19, %19 : vector<2x32xf32>
      %cst_14 = arith.constant dense<0.000000e+00> : vector<2xf32>
      %21 = vector.multi_reduction <add>, %20, %cst_14 [1] : vector<2x32xf32> to vector<2xf32>
      %22 = vector.shape_cast %21 : vector<2xf32> to vector<2x1xf32>
      %cst_15 = arith.constant 3.200000e+01 : f32
      %23 = vector.broadcast %cst_15 : f32 to vector<2x1xf32>
      %24 = arith.divf %22, %23 : vector<2x1xf32>
      %25 = vector.broadcast %17 : vector<2x1xf32> to vector<2x32xf32>
      %26 = arith.subf %13, %25 : vector<2x32xf32>
      %cst_16 = arith.constant 9.99999974E-6 : f32
      %27 = vector.broadcast %cst_16 : f32 to vector<2x1xf32>
      %28 = arith.addf %24, %27 : vector<2x1xf32>
      %29 = math.rsqrt %28 : vector<2x1xf32>
      %30 = vector.broadcast %29 : vector<2x1xf32> to vector<2x32xf32>
      %31 = arith.mulf %26, %30 : vector<2x32xf32>
      %c0_17 = arith.constant 0 : index
      %c0_18 = arith.constant 0 : index
      %32 = vector.load %arg3[%c0_17, %c0_18] : memref<1x32xf32, #tpu.memory_space<vmem>>, vector<1x32xf32>
      %33 = vector.broadcast %32 : vector<1x32xf32> to vector<2x32xf32>
      %34 = arith.mulf %31, %33 : vector<2x32xf32>
      %c0_19 = arith.constant 0 : index
      %c0_20 = arith.constant 0 : index
      %35 = vector.load %arg4[%c0_19, %c0_20] : memref<1x32xf32, #tpu.memory_space<vmem>>, vector<1x32xf32>
      %36 = vector.broadcast %35 : vector<1x32xf32> to vector<2x32xf32>
      %37 = arith.addf %34, %36 : vector<2x32xf32>
      %c0_21 = arith.constant 0 : index
      %c0_22 = arith.constant 0 : index
      %38 = vector.load %arg5[%c0_21, %c0_22] : memref<32x10xf32, #tpu.memory_space<vmem>>, vector<32x10xf32>
      %cst_23 = arith.constant dense<0.000000e+00> : vector<2x10xf32>
      %39 = tpu.matmul %37, %38, %cst_23 {dimension_numbers = #tpu.dot_dimension_numbers<[1], [0], [0], [1], [0, 0, 1, 1], [], []>} : vector<2x32xf32>, vector<32x10xf32>, vector<2x10xf32> -> vector<2x10xf32>
      %c0_24 = arith.constant 0 : index
      %c0_25 = arith.constant 0 : index
      %40 = vector.load %arg6[%c0_24, %c0_25] : memref<1x10xf32, #tpu.memory_space<vmem>>, vector<1x10xf32>
      %41 = vector.broadcast %40 : vector<1x10xf32> to vector<2x10xf32>
      %42 = arith.addf %39, %41 : vector<2x10xf32>
      %c0_26 = arith.constant 0 : index
      %c0_27 = arith.constant 0 : index
      %43 = vector.load %arg7[%c0_26, %c0_27] : memref<2x10xf32, #tpu.memory_space<vmem>>, vector<2x10xf32>
      tpu.vector_store %arg7[%c0_26, %c0_27], %42 {strides = array<i32>} : memref<2x10xf32, #tpu.memory_space<vmem>>, vector<2x10xf32>,
    } else {
    }
    return
  }
  func.func @transform_0(%arg0: i32, %arg1: i32) -> (i32, i32, i32) {
    %c0_i32 = arith.constant 0 : i32
    %c0_i32_0 = arith.constant 0 : i32
    return %arg0, %arg1, %c0_i32 : i32, i32, i32
  }
  func.func @transform_1(%arg0: i32, %arg1: i32) -> (i32, i32) {
    %c0_i32 = arith.constant 0 : i32
    %c0_i32_0 = arith.constant 0 : i32
    %c0_i32_1 = arith.constant 0 : i32
    return %c0_i32, %c0_i32_0 : i32, i32
  }
  func.func @transform_2(%arg0: i32, %arg1: i32) -> (i32, i32) {
    %c0_i32 = arith.constant 0 : i32
    %c0_i32_0 = arith.constant 0 : i32
    %c0_i32_1 = arith.constant 0 : i32
    return %c0_i32, %c0_i32_0 : i32, i32
  }
  func.func @transform_3(%arg0: i32, %arg1: i32) -> (i32, i32) {
    %c0_i32 = arith.constant 0 : i32
    %c0_i32_0 = arith.constant 0 : i32
    %c0_i32_1 = arith.constant 0 : i32
    return %c0_i32, %c0_i32_0 : i32, i32
  }
  func.func @transform_4(%arg0: i32, %arg1: i32) -> (i32, i32) {
    %c0_i32 = arith.constant 0 : i32
    %c0_i32_0 = arith.constant 0 : i32
    %c0_i32_1 = arith.constant 0 : i32
    return %c0_i32, %c0_i32_0 : i32, i32
  }
  func.func @transform_5(%arg0: i32, %arg1: i32) -> (i32, i32) {
    %c0_i32 = arith.constant 0 : i32
    %c0_i32_0 = arith.constant 0 : i32
    return %arg0, %c0_i32 : i32, i32
  }
}

module attributes {stable_mosaic.version = 11 : i64} {
  func.func @_class_head_kernel(%arg0: i32, %arg1: i32, %arg2: memref<2x8x32xf32, #tpu.memory_space<vmem>>, %arg3: memref<1x32xf32, #tpu.memory_space<vmem>>, %arg4: memref<1x32xf32, #tpu.memory_space<vmem>>, %arg5: memref<32x10xf32, #tpu.memory_space<vmem>>, %arg6: memref<1x10xf32, #tpu.memory_space<vmem>>, %arg7: memref<2x10xf32, #tpu.memory_space<vmem>>, %arg8: memref<2x32xf32, #tpu.memory_space<vmem>>) attributes {dimension_semantics = [#tpu.dimension_semantics<parallel>, #tpu.dimension_semantics<arbitrary>], iteration_bounds = array<i64: 1, 1>, scalar_prefetch = 0 : i64, scratch_operands = 1 : i64, tpu.core_type = #tpu.core_type<tc>, window_params = [{transform_indices = @transform_0, window_bounds = array<i64: 2, 8, 32>}, {pipeline_mode = #tpu.pipeline_mode<synchronous>, transform_indices = @transform_1, window_bounds = array<i64: 1, 32>}, {pipeline_mode = #tpu.pipeline_mode<synchronous>, transform_indices = @transform_2, window_bounds = array<i64: 1, 32>}, {pipeline_mode = #tpu.pipeline_mode<synchronous>, transform_indices = @transform_3, window_bounds = array<i64: 32, 10>}, {pipeline_mode = #tpu.pipeline_mode<synchronous>, transform_indices = @transform_4, window_bounds = array<i64: 1, 10>}, {transform_indices = @transform_5, window_bounds = array<i64: 2, 10>}]} {
    %c0_i32 = arith.constant 0 : i32
    %0 = arith.cmpi eq, %arg1, %c0_i32 : i32
    %1 = arith.extui %0 : i1 to i32
    %c0_i32_0 = arith.constant 0 : i32
    %2 = arith.cmpi ne, %1, %c0_i32_0 : i32
    scf.if %2 {
      %cst_9 = arith.constant 0.000000e+00 : f32
      %11 = vector.broadcast %cst_9 : f32 to vector<2x32xf32>
      %c0_10 = arith.constant 0 : index
      %c0_11 = arith.constant 0 : index
      %12 = vector.load %arg8[%c0_10, %c0_11] : memref<2x32xf32, #tpu.memory_space<vmem>>, vector<2x32xf32>
      tpu.vector_store %arg8[%c0_10, %c0_11], %11 {strides = array<i32>} : memref<2x32xf32, #tpu.memory_space<vmem>>, vector<2x32xf32>,
    } else {
    }
    %c0 = arith.constant 0 : index
    %c0_1 = arith.constant 0 : index
    %3 = vector.load %arg8[%c0, %c0_1] : memref<2x32xf32, #tpu.memory_space<vmem>>, vector<2x32xf32>
    %c0_2 = arith.constant 0 : index
    %c0_3 = arith.constant 0 : index
    %c0_4 = arith.constant 0 : index
    %4 = vector.load %arg2[%c0_2, %c0_3, %c0_4] : memref<2x8x32xf32, #tpu.memory_space<vmem>>, vector<2x8x32xf32>
    %cst = arith.constant dense<0.000000e+00> : vector<2x32xf32>
    %5 = vector.multi_reduction <add>, %4, %cst [1] : vector<2x8x32xf32> to vector<2x32xf32>
    %6 = arith.addf %3, %5 : vector<2x32xf32>
    %c0_5 = arith.constant 0 : index
    %c0_6 = arith.constant 0 : index
    %7 = vector.load %arg8[%c0_5, %c0_6] : memref<2x32xf32, #tpu.memory_space<vmem>>, vector<2x32xf32>
    tpu.vector_store %arg8[%c0_5, %c0_6], %6 {strides = array<i32>} : memref<2x32xf32, #tpu.memory_space<vmem>>, vector<2x32xf32>,
    %c0_i32_7 = arith.constant 0 : i32
    %8 = arith.cmpi eq, %arg1, %c0_i32_7 : i32
    %9 = arith.extui %8 : i1 to i32
    %c0_i32_8 = arith.constant 0 : i32
    %10 = arith.cmpi ne, %9, %c0_i32_8 : i32
    scf.if %10 {
      %c0_9 = arith.constant 0 : index
      %c0_10 = arith.constant 0 : index
      %11 = vector.load %arg8[%c0_9, %c0_10] : memref<2x32xf32, #tpu.memory_space<vmem>>, vector<2x32xf32>
      %cst_11 = arith.constant 1.250000e-01 : f32
      %12 = vector.broadcast %cst_11 : f32 to vector<2x32xf32>
      %13 = arith.mulf %11, %12 : vector<2x32xf32>
      %cst_12 = arith.constant dense<0.000000e+00> : vector<2xf32>
      %14 = vector.multi_reduction <add>, %13, %cst_12 [1] : vector<2x32xf32> to vector<2xf32>
      %15 = vector.shape_cast %14 : vector<2xf32> to vector<2x1xf32>
      %cst_13 = arith.constant 3.200000e+01 : f32
      %16 = vector.broadcast %cst_13 : f32 to vector<2x1xf32>
      %17 = arith.divf %15, %16 : vector<2x1xf32>
      %18 = vector.broadcast %17 : vector<2x1xf32> to vector<2x32xf32>
      %19 = arith.subf %13, %18 : vector<2x32xf32>
      %20 = arith.mulf %19, %19 : vector<2x32xf32>
      %cst_14 = arith.constant dense<0.000000e+00> : vector<2xf32>
      %21 = vector.multi_reduction <add>, %20, %cst_14 [1] : vector<2x32xf32> to vector<2xf32>
      %22 = vector.shape_cast %21 : vector<2xf32> to vector<2x1xf32>
      %cst_15 = arith.constant 3.200000e+01 : f32
      %23 = vector.broadcast %cst_15 : f32 to vector<2x1xf32>
      %24 = arith.divf %22, %23 : vector<2x1xf32>
      %25 = vector.broadcast %17 : vector<2x1xf32> to vector<2x32xf32>
      %26 = arith.subf %13, %25 : vector<2x32xf32>
      %cst_16 = arith.constant 9.99999974E-6 : f32
      %27 = vector.broadcast %cst_16 : f32 to vector<2x1xf32>
      %28 = arith.addf %24, %27 : vector<2x1xf32>
      %29 = math.rsqrt %28 : vector<2x1xf32>
      %30 = vector.broadcast %29 : vector<2x1xf32> to vector<2x32xf32>
      %31 = arith.mulf %26, %30 : vector<2x32xf32>
      %c0_17 = arith.constant 0 : index
      %c0_18 = arith.constant 0 : index
      %32 = vector.load %arg3[%c0_17, %c0_18] : memref<1x32xf32, #tpu.memory_space<vmem>>, vector<1x32xf32>
      %33 = vector.broadcast %32 : vector<1x32xf32> to vector<2x32xf32>
      %34 = arith.mulf %31, %33 : vector<2x32xf32>
      %c0_19 = arith.constant 0 : index
      %c0_20 = arith.constant 0 : index
      %35 = vector.load %arg4[%c0_19, %c0_20] : memref<1x32xf32, #tpu.memory_space<vmem>>, vector<1x32xf32>
      %36 = vector.broadcast %35 : vector<1x32xf32> to vector<2x32xf32>
      %37 = arith.addf %34, %36 : vector<2x32xf32>
      %c0_21 = arith.constant 0 : index
      %c0_22 = arith.constant 0 : index
      %38 = vector.load %arg5[%c0_21, %c0_22] : memref<32x10xf32, #tpu.memory_space<vmem>>, vector<32x10xf32>
      %cst_23 = arith.constant dense<0.000000e+00> : vector<2x10xf32>
      %39 = tpu.matmul %37, %38, %cst_23 {dimension_numbers = #tpu.dot_dimension_numbers<[1], [0], [0], [1], [0, 0, 1, 1], [], []>} : vector<2x32xf32>, vector<32x10xf32>, vector<2x10xf32> -> vector<2x10xf32>
      %c0_24 = arith.constant 0 : index
      %c0_25 = arith.constant 0 : index
      %40 = vector.load %arg6[%c0_24, %c0_25] : memref<1x10xf32, #tpu.memory_space<vmem>>, vector<1x10xf32>
      %41 = vector.broadcast %40 : vector<1x10xf32> to vector<2x10xf32>
      %42 = arith.addf %39, %41 : vector<2x10xf32>
      %c0_26 = arith.constant 0 : index
      %c0_27 = arith.constant 0 : index
      %43 = vector.load %arg7[%c0_26, %c0_27] : memref<2x10xf32, #tpu.memory_space<vmem>>, vector<2x10xf32>
      tpu.vector_store %arg7[%c0_26, %c0_27], %42 {strides = array<i32>} : memref<2x10xf32, #tpu.memory_space<vmem>>, vector<2x10xf32>,
    } else {
    }
    return
  }
  func.func @transform_0(%arg0: i32, %arg1: i32) -> (i32, i32, i32) {
    %c0_i32 = arith.constant 0 : i32
    %c0_i32_0 = arith.constant 0 : i32
    return %arg0, %arg1, %c0_i32 : i32, i32, i32
  }
  func.func @transform_1(%arg0: i32, %arg1: i32) -> (i32, i32) {
    %c0_i32 = arith.constant 0 : i32
    %c0_i32_0 = arith.constant 0 : i32
    %c0_i32_1 = arith.constant 0 : i32
    return %c0_i32, %c0_i32_0 : i32, i32
  }
  func.func @transform_2(%arg0: i32, %arg1: i32) -> (i32, i32) {
    %c0_i32 = arith.constant 0 : i32
    %c0_i32_0 = arith.constant 0 : i32
    %c0_i32_1 = arith.constant 0 : i32
    return %c0_i32, %c0_i32_0 : i32, i32
  }
  func.func @transform_3(%arg0: i32, %arg1: i32) -> (i32, i32) {
    %c0_i32 = arith.constant 0 : i32
    %c0_i32_0 = arith.constant 0 : i32
    %c0_i32_1 = arith.constant 0 : i32
    return %c0_i32, %c0_i32_0 : i32, i32
  }
  func.func @transform_4(%arg0: i32, %arg1: i32) -> (i32, i32) {
    %c0_i32 = arith.constant 0 : i32
    %c0_i32_0 = arith.constant 0 : i32
    %c0_i32_1 = arith.constant 0 : i32
    return %c0_i32, %c0_i32_0 : i32, i32
  }
  func.func @transform_5(%arg0: i32, %arg1: i32) -> (i32, i32) {
    %c0_i32 = arith.constant 0 : i32
    %c0_i32_0 = arith.constant 0 : i32
    return %arg0, %c0_i32 : i32, i32
  }
}

</mosaic_0001>

<llo_original>
// kernel: tpu_custom_call.1
$region0: #{tpu_custom_call.1}
  #allocation0 [shape = 'u32[]', space=smem, size = 0x4, offset = 0x4, fixed_abs, tag = 'smem constant byte address 0x4 - core index']
  #allocation1 [shape = 'u32[144,128]{1,0:T(1,128)}', space=vmem, size = 0x12000, scoped, tag = 'internal scratch']
  #allocation2 [shape = 'f32[2,32]{1,0:T(2,128)}', space=vmem, size = 0x400, scoped, tag = 'scratch operand']
  %s0 = inlined_call_operand.vmem [shape: f32[2,8,32], index: 0, kind: input, shape index: {}]
  %s1 = inlined_call_operand.vmem [shape: f32[1,32], index: 1, kind: input, shape index: {}]
  %s2 = inlined_call_operand.vmem [shape: f32[1,32], index: 2, kind: input, shape index: {}]
  %s3 = inlined_call_operand.vmem [shape: f32[32,10], index: 3, kind: input, shape index: {}]
  %s4 = inlined_call_operand.vmem [shape: f32[1,10], index: 4, kind: input, shape index: {}]
  %s5 = inlined_call_operand.hbm [shape: f32[2,10], index: 5, kind: output, shape index: {}]
  %s6 = sld [smem:[#allocation0]]
  $region38: #{tpu_custom_call.1} parent=0
    _
  %s8 = ssub.s32 1, %s6
  %s9 = scalar_select 0, %s8, %s6
  $region1: #{tpu_custom_call.1} parent=0
    #allocation3 [shape = 'u8[1024]{0}', space=vmem, size = 0x400, scoped, tag = 'output window, operand 0, single buffered']
    #allocation4 [shape = 's32[1]{0}', space=sflag, size = 0x4, scoped, tag = 'scoped memory for tpu_custom_call.1']
    %10 = vsyncpa [#allocation4], 0
    // Predicated region
    $region2: #{tpu_custom_call.1} parent=1 // pred_check
      _
    $region3: #{tpu_custom_call.1} parent=1 // pred_check_branch
      %12 = sbr.rel (0) target = $region5
    $region4: #{tpu_custom_call.1} parent=1 // pred_region
      _
    $region5: #{tpu_custom_call.1} parent=1 // pred_fallthru
      _
    // Predicated region
    $region6: #{tpu_custom_call.1} parent=1 // pred_check
      _
    $region7: #{tpu_custom_call.1} parent=1 // pred_check_branch
      %14 = sbr.rel (0) target = $region9
    $region8: #{tpu_custom_call.1} parent=1 // pred_region
      _
    $region9: #{tpu_custom_call.1} parent=1 // pred_fallthru
      _
    // Predicated region
    $region10: #{tpu_custom_call.1} parent=1 // pred_check
      _
    $region11: #{tpu_custom_call.1} parent=1 // pred_check_branch
      %16 = sbr.rel (0) target = $region13
    $region12: #{tpu_custom_call.1} parent=1 // pred_region
      _
    $region13: #{tpu_custom_call.1} parent=1 // pred_fallthru
      _
    // Predicated region
    $region14: #{tpu_custom_call.1} parent=1 // pred_check
      _
    $region15: #{tpu_custom_call.1} parent=1 // pred_check_branch
      %18 = sbr.rel (0) target = $region17
    $region16: #{tpu_custom_call.1} parent=1 // pred_region
      _
    $region17: #{tpu_custom_call.1} parent=1 // pred_fallthru
      _
    // Predicated region
    $region18: #{tpu_custom_call.1} parent=1 // pred_check
      _
    $region19: #{tpu_custom_call.1} parent=1 // pred_check_branch
      %20 = sbr.rel (0) target = $region21
    $region20: #{tpu_custom_call.1} parent=1 // pred_region
      _
    $region21: #{tpu_custom_call.1} parent=1 // pred_fallthru
      _
    %p21 = scmp.eq.s32.totalorder 0, 0
    // Predicated region
    $region22: #{tpu_custom_call.1} parent=1 // pred_check
      %p22 = pneg %p21
    $region23: #{tpu_custom_call.1} parent=1 // pred_check_branch
      %24 = sbr.rel (%p22) target = $region25
    $region24: #{tpu_custom_call.1} parent=1 // pred_region
      %vm25 = vcmask 254976
      %26 = vst.msk [vmem:[#allocation2] sm:$0x3] %vm25, 0.0
    $region25: #{tpu_custom_call.1} parent=1 // pred_fallthru
      _
    %v27 = vld [vmem:[#allocation2] sm:$0x3]
    %v28 = vld [vmem:[%s0] sm:$0xff]
    %v29 = vld [vmem:[%s0 + $0x8] sm:$0xff]
    %vm30 = vcmask 261120
    %v31 = vsel %vm30, %v28, 0.0
    %v32 = vrot.slane %v31, 4
    %v33 = vadd.f32 %v31, %v32
    %v34 = vrot.slane %v33, 2
    %v35 = vadd.f32 %v33, %v34
    %v36 = vrot.slane %v35, 1
    %v37 = vadd.f32 %v35, %v36
    %v38 = vsel %vm30, %v29, 0.0
    %v39 = vrot.slane %v38, 4
    %v40 = vadd.f32 %v38, %v39
    %v41 = vrot.slane %v40, 2
    %v42 = vadd.f32 %v40, %v41
    %v43 = vrot.slane %v42, 1
    %v44 = vadd.f32 %v42, %v43
    %vm47 = vcmask 1041409
    %v48 = vsel %vm47, %v44, %v37
    %v50 = vadd.f32 %v27, %v48
    %vm51 = vcmask 254976
    %52 = vst.msk [vmem:[#allocation2] sm:$0x3] %vm51, %v50
    // Predicated region
    $region26: #{tpu_custom_call.1} parent=1 // pred_check
      %p53 = pneg %p21
    $region27: #{tpu_custom_call.1} parent=1 // pred_check_branch
      %55 = sbr.rel (%p53) target = $region29
    $region28: #{tpu_custom_call.1} parent=1 // pred_region
      %v56 = vld [vmem:[#allocation2] sm:$0x3]
      %v57 = vmul.f32 %v56, 0.125
      %v58 = vsel %vm51, %v57, 0.0
      %59 = vadd.xlane.f32.xlu0 %v58
      %v60 = vpop.xlane.xlu0 %59
      %v61 = vrcp.pop 32.0
      %v62 = vmul.f32 %v60, %v61
      %v63 = vsub.f32 %v57, %v62
      %v64 = vmul.f32 %v63, %v63
      %v65 = vsel %vm51, %v64, 0.0
      %66 = vadd.xlane.f32.xlu0 %v65
      %v67 = vpop.xlane.xlu0 %66
      %v68 = vmul.f32 %v67, %v61
      %v69 = vadd.f32 %v68, 1e-05
      %v70 = vrsqrt.pop %v69
      %v71 = vmul.f32 %v63, %v70
      %v72 = vld [vmem:[%s1] sm:$0x1]
      %v74 = vlaneseq
      %v75 = vshrl.u32 %v74, 7
      %v76 = vsub.s32 0, %v75
      %v77 = vrot.slane %v72, %v76
      %v79 = vmul.f32 %v71, %v77
      %v80 = vld [vmem:[%s2] sm:$0x1]
      %v82 = vlaneseq
      %v83 = vshrl.u32 %v82, 7
      %v84 = vsub.s32 0, %v83
      %v85 = vrot.slane %v80, %v84
      %v87 = vadd.f32 %v79, %v85
      %v88 = vld [vmem:[%s3] sm:$0xff]
      %v89 = vld [vmem:[%s3 + $0x8] sm:$0xff]
      %v90 = vld [vmem:[%s3 + $0x10] sm:$0xff]
      %v91 = vld [vmem:[%s3 + $0x18] sm:$0xff]
      %v92 = vld [vmem:[%s4] sm:$0x1]
      %v94 = vlaneseq
      %v95 = vshrl.u32 %v94, 7
      %v96 = vsub.s32 0, %v95
      %v97 = vrot.slane %v92, %v96
      %v100 = vsel %vm30, %v87, 0
      %102 = vmatprep.subr.mxu0 0.0
      %103 = vmatpush1.msra.mxu0 %v88
      %104 = vmatprep.subr.mxu0 0.0
      %105 = vmatpush1.msra.mxu0 %v89
      %106 = vmatprep.subr.mxu0 0.0
      %107 = vmatpush1.msra.mxu0 %v90
      %108 = vmatprep.subr.mxu0 0.0
      %109 = vmatpush1.msra.mxu0 %v91
      %110 = vmatprep.subr.mxu0 0.0
      %111 = vmatpush1.msra.mxu0 0.0
      %112 = vmatprep.subr.mxu0 0.0
      %113 = vmatpush1.msra.mxu0 0.0
      %114 = vmatprep.subr.mxu0 0.0
      %115 = vmatpush1.msra.mxu0 0.0
      %116 = vmatprep.subr.mxu0 0.0
      %117 = vmatpush1.msra.mxu0 0.0
      %118 = vmatprep.subr.mxu0 0.0
      %119 = vmatpush1.msra.mxu0 0.0
      %120 = vmatprep.subr.mxu0 0.0
      %121 = vmatpush1.msra.mxu0 0.0
      %122 = vmatprep.subr.mxu0 0.0
      %123 = vmatpush1.msra.mxu0 0.0
      %124 = vmatprep.subr.mxu0 0.0
      %125 = vmatpush1.msra.mxu0 0.0
      %126 = vmatprep.subr.mxu0 0.0
      %127 = vmatpush1.msra.mxu0 0.0
      %128 = vmatprep.subr.mxu0 0.0
      %129 = vmatpush1.msra.mxu0 0.0
      %130 = vmatprep.subr.mxu0 0.0
      %131 = vmatpush1.msra.mxu0 0.0
      %132 = vmatprep.subr.mxu0 0.0
      %133 = vmatpush1.msra.mxu0 0.0
      %134 = vmatprep.subr.mxu0 0.0
      %135 = vmatpush1.msra.mxu0 0.0
      %136 = vmatprep.subr.mxu0 0.0
      %137 = vmatpush1.msra.mxu0 0.0
      %138 = vmatprep.subr.mxu0 0.0
      %139 = vmatpush1.msra.mxu0 0.0
      %140 = vmatprep.subr.mxu0 0.0
      %141 = vmatpush1.msra.mxu0 0.0
      %142 = vmatprep.subr.mxu0 0.0
      %143 = vmatpush1.msra.mxu0 0.0
      %144 = vmatprep.subr.mxu0 0.0
      %145 = vmatpush1.msra.mxu0 0.0
      %146 = vmatprep.subr.mxu0 0.0
      %147 = vmatpush1.msra.mxu0 0.0
      %148 = vmatprep.subr.mxu0 0.0
      %149 = vmatpush1.msra.mxu0 0.0
      %150 = vmatprep.subr.mxu0 0.0
      %151 = vmatpush1.msra.mxu0 0.0
      %152 = vmatprep.subr.mxu0 0.0
      %153 = vmatpush1.msra.mxu0 0.0
      %154 = vmatprep.subr.mxu0 0.0
      %155 = vmatpush1.msra.mxu0 0.0
      %156 = vmatprep.subr.mxu0 0.0
      %157 = vmatpush1.msra.mxu0 0.0
      %158 = vmatprep.subr.mxu0 0.0
      %159 = vmatpush1.msra.mxu0 0.0
      %160 = vmatprep.subr.mxu0 0.0
      %161 = vmatpush1.msra.mxu0 0.0
      %162 = vmatprep.subr.mxu0 0.0
      %163 = vmatpush1.msra.mxu0 0.0
      %164 = vmatprep.subr.mxu0 0.0
      %165 = vmatpush1.msra.mxu0 0.0
      %166 = vmatprep.mubr.f32.mxu0 0.0
      %167 = vmatmul.mubr.f32.gmra.mrb[0].mxu0 %v100
      %v168 = vpop.f32.mrb[0].mxu0
      %v169 = vadd.f32 %v97, %v168
      %v170 = vpop.f32.mrb[0].mxu0
      %171 = vdwg.mxu0
      %vm172 = vcmask 74752
      %173 = vst.msk [vmem:[#allocation3] sm:$0x3] %vm172, %v169
    $region29: #{tpu_custom_call.1} parent=1 // pred_fallthru
      _
    // Predicated region
    $region30: #{tpu_custom_call.1} parent=1 // pred_check
      _
    $region31: #{tpu_custom_call.1} parent=1 // pred_check_branch
      %175 = sbr.rel (0) target = $region33
    $region32: #{tpu_custom_call.1} parent=1 // pred_region
      %s177 = ssub.s32 32, 32
      %178 = vsyncadd [#allocation4], %s177
      %s180 = sshll.u32 [#allocation3], 4
      %s181 = int_to_ptr.vmem [resolvable:$true] %s180
      %183 = dma.vmem_to_hbm [thread:$0]  %s181, 32, %s5, [#allocation4]
    $region33: #{tpu_custom_call.1} parent=1 // pred_fallthru
      _
    // Predicated region
    $region34: #{tpu_custom_call.1} parent=1 // pred_check
      _
    $region35: #{tpu_custom_call.1} parent=1 // pred_check_branch
      %185 = sbr.rel (0) target = $region37
    $region36: #{tpu_custom_call.1} parent=1 // pred_region
      %186 = dma.done [#allocation4], 32
    $region37: #{tpu_custom_call.1} parent=1 // pred_fallthru
      _
    %187 = vsyncpa [#allocation4], 1

// kernel: tpu_custom_call.1
$region0: #{tpu_custom_call.1}
  #allocation0 [shape = 'u32[]', space=smem, size = 0x4, offset = 0x4, fixed_abs, tag = 'smem constant byte address 0x4 - core index']
  #allocation1 [shape = 'u32[144,128]{1,0:T(1,128)}', space=vmem, size = 0x12000, scoped, tag = 'internal scratch']
  #allocation2 [shape = 'f32[2,32]{1,0:T(2,128)}', space=vmem, size = 0x400, scoped, tag = 'scratch operand']
  %s0 = inlined_call_operand.vmem [shape: f32[2,8,32], index: 0, kind: input, shape index: {}]
  %s1 = inlined_call_operand.vmem [shape: f32[1,32], index: 1, kind: input, shape index: {}]
  %s2 = inlined_call_operand.vmem [shape: f32[1,32], index: 2, kind: input, shape index: {}]
  %s3 = inlined_call_operand.vmem [shape: f32[32,10], index: 3, kind: input, shape index: {}]
  %s4 = inlined_call_operand.vmem [shape: f32[1,10], index: 4, kind: input, shape index: {}]
  %s5 = inlined_call_operand.hbm [shape: f32[2,10], index: 5, kind: output, shape index: {}]
  %s6 = sld [smem:[#allocation0]]
  $region38: #{tpu_custom_call.1} parent=0
    _
  %s8 = ssub.s32 1, %s6
  %s9 = scalar_select 0, %s8, %s6
  $region1: #{tpu_custom_call.1} parent=0
    #allocation3 [shape = 'u8[1024]{0}', space=vmem, size = 0x400, scoped, tag = 'output window, operand 0, single buffered']
    #allocation4 [shape = 's32[1]{0}', space=sflag, size = 0x4, scoped, tag = 'scoped memory for tpu_custom_call.1']
    %10 = vsyncpa [#allocation4], 0
    // Predicated region
    $region2: #{tpu_custom_call.1} parent=1 // pred_check
      _
    $region3: #{tpu_custom_call.1} parent=1 // pred_check_branch
      %12 = sbr.rel (0) target = $region5
    $region4: #{tpu_custom_call.1} parent=1 // pred_region
      _
    $region5: #{tpu_custom_call.1} parent=1 // pred_fallthru
      _
    // Predicated region
    $region6: #{tpu_custom_call.1} parent=1 // pred_check
      _
    $region7: #{tpu_custom_call.1} parent=1 // pred_check_branch
      %14 = sbr.rel (0) target = $region9
    $region8: #{tpu_custom_call.1} parent=1 // pred_region
      _
    $region9: #{tpu_custom_call.1} parent=1 // pred_fallthru
      _
    // Predicated region
    $region10: #{tpu_custom_call.1} parent=1 // pred_check
      _
    $region11: #{tpu_custom_call.1} parent=1 // pred_check_branch
      %16 = sbr.rel (0) target = $region13
    $region12: #{tpu_custom_call.1} parent=1 // pred_region
      _
    $region13: #{tpu_custom_call.1} parent=1 // pred_fallthru
      _
    // Predicated region
    $region14: #{tpu_custom_call.1} parent=1 // pred_check
      _
    $region15: #{tpu_custom_call.1} parent=1 // pred_check_branch
      %18 = sbr.rel (0) target = $region17
    $region16: #{tpu_custom_call.1} parent=1 // pred_region
      _
    $region17: #{tpu_custom_call.1} parent=1 // pred_fallthru
      _
    // Predicated region
    $region18: #{tpu_custom_call.1} parent=1 // pred_check
      _
    $region19: #{tpu_custom_call.1} parent=1 // pred_check_branch
      %20 = sbr.rel (0) target = $region21
    $region20: #{tpu_custom_call.1} parent=1 // pred_region
      _
    $region21: #{tpu_custom_call.1} parent=1 // pred_fallthru
      _
    %p21 = scmp.eq.s32.totalorder 0, 0
    // Predicated region
    $region22: #{tpu_custom_call.1} parent=1 // pred_check
      %p22 = pneg %p21
    $region23: #{tpu_custom_call.1} parent=1 // pred_check_branch
      %24 = sbr.rel (%p22) target = $region25
    $region24: #{tpu_custom_call.1} parent=1 // pred_region
      %vm25 = vcmask 254976
      %26 = vst.msk [vmem:[#allocation2] sm:$0x3] %vm25, 0.0
    $region25: #{tpu_custom_call.1} parent=1 // pred_fallthru
      _
    %v27 = vld [vmem:[#allocation2] sm:$0x3]
    %v28 = vld [vmem:[%s0] sm:$0xff]
    %v29 = vld [vmem:[%s0 + $0x8] sm:$0xff]
    %vm30 = vcmask 261120
    %v31 = vsel %vm30, %v28, 0.0
    %v32 = vrot.slane %v31, 4
    %v33 = vadd.f32 %v31, %v32
    %v34 = vrot.slane %v33, 2
    %v35 = vadd.f32 %v33, %v34
    %v36 = vrot.slane %v35, 1
    %v37 = vadd.f32 %v35, %v36
    %v38 = vsel %vm30, %v29, 0.0
    %v39 = vrot.slane %v38, 4
    %v40 = vadd.f32 %v38, %v39
    %v41 = vrot.slane %v40, 2
    %v42 = vadd.f32 %v40, %v41
    %v43 = vrot.slane %v42, 1
    %v44 = vadd.f32 %v42, %v43
    %vm47 = vcmask 1041409
    %v48 = vsel %vm47, %v44, %v37
    %v50 = vadd.f32 %v27, %v48
    %vm51 = vcmask 254976
    %52 = vst.msk [vmem:[#allocation2] sm:$0x3] %vm51, %v50
    // Predicated region
    $region26: #{tpu_custom_call.1} parent=1 // pred_check
      %p53 = pneg %p21
    $region27: #{tpu_custom_call.1} parent=1 // pred_check_branch
      %55 = sbr.rel (%p53) target = $region29
    $region28: #{tpu_custom_call.1} parent=1 // pred_region
      %v56 = vld [vmem:[#allocation2] sm:$0x3]
      %v57 = vmul.f32 %v56, 0.125
      %v58 = vsel %vm51, %v57, 0.0
      %59 = vadd.xlane.f32.xlu0 %v58
      %v60 = vpop.xlane.xlu0 %59
      %v61 = vrcp.pop 32.0
      %v62 = vmul.f32 %v60, %v61
      %v63 = vsub.f32 %v57, %v62
      %v64 = vmul.f32 %v63, %v63
      %v65 = vsel %vm51, %v64, 0.0
      %66 = vadd.xlane.f32.xlu0 %v65
      %v67 = vpop.xlane.xlu0 %66
      %v68 = vmul.f32 %v67, %v61
      %v69 = vadd.f32 %v68, 1e-05
      %v70 = vrsqrt.pop %v69
      %v71 = vmul.f32 %v63, %v70
      %v72 = vld [vmem:[%s1] sm:$0x1]
      %v74 = vlaneseq
      %v75 = vshrl.u32 %v74, 7
      %v76 = vsub.s32 0, %v75
      %v77 = vrot.slane %v72, %v76
      %v79 = vmul.f32 %v71, %v77
      %v80 = vld [vmem:[%s2] sm:$0x1]
      %v82 = vlaneseq
      %v83 = vshrl.u32 %v82, 7
      %v84 = vsub.s32 0, %v83
      %v85 = vrot.slane %v80, %v84
      %v87 = vadd.f32 %v79, %v85
      %v88 = vld [vmem:[%s3] sm:$0xff]
      %v89 = vld [vmem:[%s3 + $0x8] sm:$0xff]
      %v90 = vld [vmem:[%s3 + $0x10] sm:$0xff]
      %v91 = vld [vmem:[%s3 + $0x18] sm:$0xff]
      %v92 = vld [vmem:[%s4] sm:$0x1]
      %v94 = vlaneseq
      %v95 = vshrl.u32 %v94, 7
      %v96 = vsub.s32 0, %v95
      %v97 = vrot.slane %v92, %v96
      %v100 = vsel %vm30, %v87, 0
      %102 = vmatprep.subr.mxu0 0.0
      %103 = vmatpush1.msra.mxu0 %v88
      %104 = vmatprep.subr.mxu0 0.0
      %105 = vmatpush1.msra.mxu0 %v89
      %106 = vmatprep.subr.mxu0 0.0
      %107 = vmatpush1.msra.mxu0 %v90
      %108 = vmatprep.subr.mxu0 0.0
      %109 = vmatpush1.msra.mxu0 %v91
      %110 = vmatprep.subr.mxu0 0.0
      %111 = vmatpush1.msra.mxu0 0.0
      %112 = vmatprep.subr.mxu0 0.0
      %113 = vmatpush1.msra.mxu0 0.0
      %114 = vmatprep.subr.mxu0 0.0
      %115 = vmatpush1.msra.mxu0 0.0
      %116 = vmatprep.subr.mxu0 0.0
      %117 = vmatpush1.msra.mxu0 0.0
      %118 = vmatprep.subr.mxu0 0.0
      %119 = vmatpush1.msra.mxu0 0.0
      %120 = vmatprep.subr.mxu0 0.0
      %121 = vmatpush1.msra.mxu0 0.0
      %122 = vmatprep.subr.mxu0 0.0
      %123 = vmatpush1.msra.mxu0 0.0
      %124 = vmatprep.subr.mxu0 0.0
      %125 = vmatpush1.msra.mxu0 0.0
      %126 = vmatprep.subr.mxu0 0.0
      %127 = vmatpush1.msra.mxu0 0.0
      %128 = vmatprep.subr.mxu0 0.0
      %129 = vmatpush1.msra.mxu0 0.0
      %130 = vmatprep.subr.mxu0 0.0
      %131 = vmatpush1.msra.mxu0 0.0
      %132 = vmatprep.subr.mxu0 0.0
      %133 = vmatpush1.msra.mxu0 0.0
      %134 = vmatprep.subr.mxu0 0.0
      %135 = vmatpush1.msra.mxu0 0.0
      %136 = vmatprep.subr.mxu0 0.0
      %137 = vmatpush1.msra.mxu0 0.0
      %138 = vmatprep.subr.mxu0 0.0
      %139 = vmatpush1.msra.mxu0 0.0
      %140 = vmatprep.subr.mxu0 0.0
      %141 = vmatpush1.msra.mxu0 0.0
      %142 = vmatprep.subr.mxu0 0.0
      %143 = vmatpush1.msra.mxu0 0.0
      %144 = vmatprep.subr.mxu0 0.0
      %145 = vmatpush1.msra.mxu0 0.0
      %146 = vmatprep.subr.mxu0 0.0
      %147 = vmatpush1.msra.mxu0 0.0
      %148 = vmatprep.subr.mxu0 0.0
      %149 = vmatpush1.msra.mxu0 0.0
      %150 = vmatprep.subr.mxu0 0.0
      %151 = vmatpush1.msra.mxu0 0.0
      %152 = vmatprep.subr.mxu0 0.0
      %153 = vmatpush1.msra.mxu0 0.0
      %154 = vmatprep.subr.mxu0 0.0
      %155 = vmatpush1.msra.mxu0 0.0
      %156 = vmatprep.subr.mxu0 0.0
      %157 = vmatpush1.msra.mxu0 0.0
      %158 = vmatprep.subr.mxu0 0.0
      %159 = vmatpush1.msra.mxu0 0.0
      %160 = vmatprep.subr.mxu0 0.0
      %161 = vmatpush1.msra.mxu0 0.0
      %162 = vmatprep.subr.mxu0 0.0
      %163 = vmatpush1.msra.mxu0 0.0
      %164 = vmatprep.subr.mxu0 0.0
      %165 = vmatpush1.msra.mxu0 0.0
      %166 = vmatprep.mubr.f32.mxu0 0.0
      %167 = vmatmul.mubr.f32.gmra.mrb[0].mxu0 %v100
      %v168 = vpop.f32.mrb[0].mxu0
      %v169 = vadd.f32 %v97, %v168
      %v170 = vpop.f32.mrb[0].mxu0
      %171 = vdwg.mxu0
      %vm172 = vcmask 74752
      %173 = vst.msk [vmem:[#allocation3] sm:$0x3] %vm172, %v169
    $region29: #{tpu_custom_call.1} parent=1 // pred_fallthru
      _
    // Predicated region
    $region30: #{tpu_custom_call.1} parent=1 // pred_check
      _
    $region31: #{tpu_custom_call.1} parent=1 // pred_check_branch
      %175 = sbr.rel (0) target = $region33
    $region32: #{tpu_custom_call.1} parent=1 // pred_region
      %s177 = ssub.s32 32, 32
      %178 = vsyncadd [#allocation4], %s177
      %s180 = sshll.u32 [#allocation3], 4
      %s181 = int_to_ptr.vmem [resolvable:$true] %s180
      %183 = dma.vmem_to_hbm [thread:$0]  %s181, 32, %s5, [#allocation4]
    $region33: #{tpu_custom_call.1} parent=1 // pred_fallthru
      _
    // Predicated region
    $region34: #{tpu_custom_call.1} parent=1 // pred_check
      _
    $region35: #{tpu_custom_call.1} parent=1 // pred_check_branch
      %185 = sbr.rel (0) target = $region37
    $region36: #{tpu_custom_call.1} parent=1 // pred_region
      %186 = dma.done [#allocation4], 32
    $region37: #{tpu_custom_call.1} parent=1 // pred_fallthru
      _
    %187 = vsyncpa [#allocation4], 1

</llo_original>
